<compile_context>
chip_gen: v5e
topology: v5e:2x2
jax: 0.10.0
libtpu: 0.0.40
codegen_flags: <defaults>
</compile_context>

<pallas_src>
import functools

import jax
import jax.numpy as jnp
from jax.experimental import pallas as pl
from jax.experimental.pallas import tpu as pltpu


def _disc_kernel(x_ref, w1_ref, b1_ref, w2_ref, b2_ref, w3t_ref, b3_ref,
                 o_ref, *, slope):
    # x arrives f32; cast the activation tile to bf16 for the MXU. Weights are
    # already bf16 (cast once in the wrapper). Accumulate in f32.
    x = x_ref[...].astype(jnp.bfloat16)

    # Linear 1 + LeakyReLU (elementwise math in f32 on the VPU).
    h1 = jnp.dot(x, w1_ref[...], preferred_element_type=jnp.float32) + b1_ref[...]
    h1 = jnp.maximum(h1, slope * h1)

    # Linear 2 + LeakyReLU.
    h2 = jnp.dot(h1.astype(jnp.bfloat16), w2_ref[...],
                 preferred_element_type=jnp.float32) + b2_ref[...]
    h2 = jnp.maximum(h2, slope * h2)

    # Final Linear(H2, 1): w3 is pre-transposed to (H2, 1) so this is a plain
    # MXU matmul producing a (bm, 1) column — no in-kernel transpose of h2.
    logit = jnp.dot(h2.astype(jnp.bfloat16), w3t_ref[...],
                    preferred_element_type=jnp.float32) + b3_ref[...]   # (bm, 1)

    # Sigmoid: exp on the EUP, approx reciprocal also on the EUP slot.
    o_ref[...] = pl.reciprocal(1.0 + jnp.exp(-logit), approx=True)


def _vmem_physical_bytes():
    try:
        return int(pltpu.get_tpu_info().vmem_capacity_bytes)
    except Exception:
        return 64 << 20   # conservative (v7x-sized) fallback


def _tile_vmem_bytes(bm, x_size, h1, h2):
    """Per-step working set: double-buffered f32 x tile, f32 intermediates,
    bf16 re-casts, double-buffered (bm, 1) f32 output."""
    return (2 * 4 * bm * x_size          # x tile (f32, 2 pipeline buffers)
            + 4 * bm * (h1 + h2)         # f32 h1, h2
            + 2 * bm * (h1 + h2)         # bf16 copies fed to the next matmul
            + 2 * 4 * bm)                # output tile (f32, 2 buffers)


def _pick_bm(B, x_size, h1, h2, budget=24 << 20):
    """Single grid step whenever it fits (per-step fixed cost dominates at these
    sizes); otherwise prefer tiles that are multiples of 256 rows so the MXU's
    256 rows are filled on v6e/v7x and megacore has >=2 parallel steps."""
    if B <= 1024 and _tile_vmem_bytes(B, x_size, h1, h2) <= budget:
        return B
    for cand in (1024, 512, 256):
        if cand < B and B % cand == 0 and _tile_vmem_bytes(cand, x_size, h1, h2) <= budget:
            return cand
    if _tile_vmem_bytes(B, x_size, h1, h2) <= budget:
        return B
    for cand in range(min(B, 4096), 7, -1):
        if B % cand == 0 and cand % 8 == 0 and _tile_vmem_bytes(cand, x_size, h1, h2) <= budget:
            return cand
    return B


def discriminator_forward(x, params, *, slope=0.2, bm=None):
    """x: [B, x_size] float32. params: w1 (X,H1), b1 (1,H1), w2 (H1,H2),
    b2 (1,H2), w3 (1,H2) [PyTorch layout], b3 (1,1). Returns sigmoid scores (B, 1)."""
    B, x_size = x.shape
    h1 = params["w1"].shape[1]
    h2 = params["w2"].shape[1]

    if bm is None:
        bm = _pick_bm(B, x_size, h1, h2)
    assert B % bm == 0, "batch must be divisible by the batch tile"
    n_tiles = B // bm

    # One-time (outside the kernel): bf16 weights, pre-transposed final layer.
    w1 = params["w1"].astype(jnp.bfloat16)
    w2 = params["w2"].astype(jnp.bfloat16)
    w3t = params["w3"].T.astype(jnp.bfloat16)          # (H2, 1)
    b1 = params["b1"].astype(jnp.float32)
    b2 = params["b2"].astype(jnp.float32)
    b3 = params["b3"].astype(jnp.float32)

    kernel = functools.partial(_disc_kernel, slope=slope)

    def _const_spec(shape):
        # Constant block index across the grid -> fetched once; single-buffer it.
        return pl.BlockSpec(shape, lambda i: (0,) * len(shape),
                            pipeline_mode=pl.Buffered(1))

    # Advisory cost for XLA scheduling of surrounding ops.
    flops = 2 * B * (x_size * h1 + h1 * h2 + h2)
    bytes_accessed = (4 * B * x_size                       # x (f32)
                      + 2 * (x_size * h1 + h1 * h2 + h2)   # bf16 weights
                      + 4 * (h1 + h2 + 1)                  # f32 biases
                      + 4 * B)                             # output
    cost = pl.CostEstimate(flops=flops, transcendentals=2 * B,
                           bytes_accessed=bytes_accessed)

    # Generation-aware VMEM budget: weights single-buffered, x/out double-buffered.
    weight_bytes = 2 * (x_size * h1 + h1 * h2 + h2) + 4 * (h1 + h2 + 1)
    est = _tile_vmem_bytes(bm, x_size, h1, h2) + weight_bytes
    if est < (14 << 20):                      # below v5e's 16 MiB scoped default
        vmem_limit = None
    else:
        phys = _vmem_physical_bytes()
        cap = min(max(phys - (16 << 20), 24 << 20), 100 << 20)   # ~48 MiB on v7x
        vmem_limit = min(max(2 * est, 16 << 20), cap)

    out = pl.pallas_call(
        kernel,
        out_shape=jax.ShapeDtypeStruct((B, 1), jnp.float32),
        grid_spec=pltpu.PrefetchScalarGridSpec(
            num_scalar_prefetch=0,
            grid=(n_tiles,),
            in_specs=[
                pl.BlockSpec((bm, x_size), lambda i: (i, 0)),   # x tile
                _const_spec((x_size, h1)),                      # w1 (bf16)
                _const_spec((1, h1)),                           # b1
                _const_spec((h1, h2)),                          # w2 (bf16)
                _const_spec((1, h2)),                           # b2
                _const_spec((h2, 1)),                           # w3^T (bf16)
                _const_spec((1, 1)),                            # b3
            ],
            out_specs=pl.BlockSpec((bm, 1), lambda i: (i, 0)),
        ),
        compiler_params=pltpu.CompilerParams(
            dimension_semantics=("parallel",),
            vmem_limit_bytes=vmem_limit),
        cost_estimate=cost,
    )(x, w1, b1, w2, b2, w3t, b3)

    return out                                   # (B, 1), matches the module


def init_params(key, x_size, h1, h2):
    """Deterministic init mimicking PyTorch Linear default (uniform ±1/sqrt(fan_in))."""
    ks = jax.random.split(key, 6)

    def lin(kw, kb, fan_in, fan_out, w_shape):
        bound = 1.0 / jnp.sqrt(fan_in)
        w = jax.random.uniform(kw, w_shape, jnp.float32, -bound, bound)
        b = jax.random.uniform(kb, (1, fan_out), jnp.float32, -bound, bound)
        return w, b

    w1, b1 = lin(ks[0], ks[1], x_size, h1, (x_size, h1))
    w2, b2 = lin(ks[2], ks[3], h1, h2, (h1, h2))
    w3, b3 = lin(ks[4], ks[5], h2, 1, (1, h2))   # PyTorch layout: (out=1, in=H2)
    return dict(w1=w1, b1=b1, w2=w2, b2=b2, w3=w3, b3=b3)


def reference_forward(x, p, slope=0.2):
    h = x @ p["w1"] + p["b1"]
    h = jnp.where(h > 0, h, slope * h)
    h = h @ p["w2"] + p["b2"]
    h = jnp.where(h > 0, h, slope * h)
    logit = h @ p["w3"].T + p["b3"]
    return jax.nn.sigmoid(logit)


if __name__ == "__main__":
    # Config consistent with the module's forward:
    #   x_size=256, D_h1_size=128, D_h2_size=128, LeakyReLU_slope=0.2
    B, X, H1, H2 = 256, 256, 128, 128
    slope = 0.2

    key = jax.random.PRNGKey(0)
    kx, kp = jax.random.split(key)
    x = jax.random.normal(kx, (B, X), dtype=jnp.float32)
    params = init_params(kp, X, H1, H2)

    out = discriminator_forward(x, params, slope=slope)
    out = jax.block_until_ready(out)

    ref = reference_forward(x, params, slope=slope)
    assert out.shape == (B, 1)
    # bf16 matmul inputs (f32 accumulation) + approx reciprocal => loose
    # tolerance vs. the pure-f32 reference.
    max_err = float(jnp.max(jnp.abs(out - ref)))
    assert max_err < 2.5e-2, f"max abs err {max_err}"

    print("KERNEL_OK")
</pallas_src>

<mosaic_0001>
module attributes {stable_mosaic.version = 11 : i64} {
  func.func @_disc_kernel(%arg0: i32, %arg1: memref<256x256xf32, #tpu.memory_space<vmem>>, %arg2: memref<256x128xbf16, #tpu.memory_space<vmem>>, %arg3: memref<1x128xf32, #tpu.memory_space<vmem>>, %arg4: memref<128x128xbf16, #tpu.memory_space<vmem>>, %arg5: memref<1x128xf32, #tpu.memory_space<vmem>>, %arg6: memref<128x1xbf16, #tpu.memory_space<vmem>>, %arg7: memref<1x1xf32, #tpu.memory_space<vmem>>, %arg8: memref<256x1xf32, #tpu.memory_space<vmem>>) attributes {dimension_semantics = [#tpu.dimension_semantics<parallel>], iteration_bounds = array<i64: 1>, scalar_prefetch = 0 : i64, scratch_operands = 0 : i64, tpu.core_type = #tpu.core_type<tc>, window_params = [{transform_indices = @transform_0, window_bounds = array<i64: 256, 256>}, {pipeline_mode = #tpu.pipeline_mode<synchronous>, transform_indices = @transform_1, window_bounds = array<i64: 256, 128>}, {pipeline_mode = #tpu.pipeline_mode<synchronous>, transform_indices = @transform_2, window_bounds = array<i64: 1, 128>}, {pipeline_mode = #tpu.pipeline_mode<synchronous>, transform_indices = @transform_3, window_bounds = array<i64: 128, 128>}, {pipeline_mode = #tpu.pipeline_mode<synchronous>, transform_indices = @transform_4, window_bounds = array<i64: 1, 128>}, {pipeline_mode = #tpu.pipeline_mode<synchronous>, transform_indices = @transform_5, window_bounds = array<i64: 128, 1>}, {pipeline_mode = #tpu.pipeline_mode<synchronous>, transform_indices = @transform_6, window_bounds = array<i64: 1, 1>}, {transform_indices = @transform_7, window_bounds = array<i64: 256, 1>}]} {
    %c0 = arith.constant 0 : index
    %c0_0 = arith.constant 0 : index
    %0 = vector.load %arg1[%c0, %c0_0] : memref<256x256xf32, #tpu.memory_space<vmem>>, vector<256x256xf32>
    %1 = arith.truncf %0 : vector<256x256xf32> to vector<256x256xbf16>
    %c0_1 = arith.constant 0 : index
    %c0_2 = arith.constant 0 : index
    %2 = vector.load %arg2[%c0_1, %c0_2] : memref<256x128xbf16, #tpu.memory_space<vmem>>, vector<256x128xbf16>
    %cst = arith.constant dense<0.000000e+00> : vector<256x128xf32>
    %3 = tpu.matmul %1, %2, %cst {dimension_numbers = #tpu.dot_dimension_numbers<[1], [0], [0], [1], [0, 0, 1, 1], [], []>} : vector<256x256xbf16>, vector<256x128xbf16>, vector<256x128xf32> -> vector<256x128xf32>
    %c0_3 = arith.constant 0 : index
    %c0_4 = arith.constant 0 : index
    %4 = vector.load %arg3[%c0_3, %c0_4] : memref<1x128xf32, #tpu.memory_space<vmem>>, vector<1x128xf32>
    %5 = vector.broadcast %4 : vector<1x128xf32> to vector<256x128xf32>
    %6 = arith.addf %3, %5 : vector<256x128xf32>
    %cst_5 = arith.constant 2.000000e-01 : f32
    %7 = vector.broadcast %cst_5 : f32 to vector<256x128xf32>
    %8 = arith.mulf %7, %6 : vector<256x128xf32>
    %9 = arith.maximumf %6, %8 : vector<256x128xf32>
    %10 = arith.truncf %9 : vector<256x128xf32> to vector<256x128xbf16>
    %c0_6 = arith.constant 0 : index
    %c0_7 = arith.constant 0 : index
    %11 = vector.load %arg4[%c0_6, %c0_7] : memref<128x128xbf16, #tpu.memory_space<vmem>>, vector<128x128xbf16>
    %cst_8 = arith.constant dense<0.000000e+00> : vector<256x128xf32>
    %12 = tpu.matmul %10, %11, %cst_8 {dimension_numbers = #tpu.dot_dimension_numbers<[1], [0], [0], [1], [0, 0, 1, 1], [], []>} : vector<256x128xbf16>, vector<128x128xbf16>, vector<256x128xf32> -> vector<256x128xf32>
    %c0_9 = arith.constant 0 : index
    %c0_10 = arith.constant 0 : index
    %13 = vector.load %arg5[%c0_9, %c0_10] : memref<1x128xf32, #tpu.memory_space<vmem>>, vector<1x128xf32>
    %14 = vector.broadcast %13 : vector<1x128xf32> to vector<256x128xf32>
    %15 = arith.addf %12, %14 : vector<256x128xf32>
    %cst_11 = arith.constant 2.000000e-01 : f32
    %16 = vector.broadcast %cst_11 : f32 to vector<256x128xf32>
    %17 = arith.mulf %16, %15 : vector<256x128xf32>
    %18 = arith.maximumf %15, %17 : vector<256x128xf32>
    %19 = arith.truncf %18 : vector<256x128xf32> to vector<256x128xbf16>
    %c0_12 = arith.constant 0 : index
    %c0_13 = arith.constant 0 : index
    %20 = vector.load %arg6[%c0_12, %c0_13] : memref<128x1xbf16, #tpu.memory_space<vmem>>, vector<128x1xbf16>
    %cst_14 = arith.constant dense<0.000000e+00> : vector<256x1xf32>
    %21 = tpu.matmul %19, %20, %cst_14 {dimension_numbers = #tpu.dot_dimension_numbers<[1], [0], [0], [1], [0, 0, 1, 1], [], []>} : vector<256x128xbf16>, vector<128x1xbf16>, vector<256x1xf32> -> vector<256x1xf32>
    %c0_15 = arith.constant 0 : index
    %c0_16 = arith.constant 0 : index
    %22 = vector.load %arg7[%c0_15, %c0_16] : memref<1x1xf32, #tpu.memory_space<vmem>>, vector<1x1xf32>
    %23 = vector.broadcast %22 : vector<1x1xf32> to vector<256x1xf32>
    %24 = arith.addf %21, %23 : vector<256x1xf32>
    %cst_17 = arith.constant 0.000000e+00 : f32
    %25 = vector.broadcast %cst_17 : f32 to vector<256x1xf32>
    %26 = arith.subf %25, %24 : vector<256x1xf32>
    %27 = math.exp %26 : vector<256x1xf32>
    %cst_18 = arith.constant 1.000000e+00 : f32
    %28 = vector.broadcast %cst_18 : f32 to vector<256x1xf32>
    %29 = arith.addf %28, %27 : vector<256x1xf32>
    %30 = tpu.reciprocal %29 {approx = true} : vector<256x1xf32> -> vector<256x1xf32>
    %c0_19 = arith.constant 0 : index
    %c0_20 = arith.constant 0 : index
    %31 = vector.load %arg8[%c0_19, %c0_20] : memref<256x1xf32, #tpu.memory_space<vmem>>, vector<256x1xf32>
    tpu.vector_store %arg8[%c0_19, %c0_20], %30 {strides = array<i32>} : memref<256x1xf32, #tpu.memory_space<vmem>>, vector<256x1xf32>,
    return
  }
  func.func @transform_0(%arg0: i32) -> (i32, i32) {
    %c0_i32 = arith.constant 0 : i32
    %c0_i32_0 = arith.constant 0 : i32
    return %arg0, %c0_i32 : i32, i32
  }
  func.func @transform_1(%arg0: i32) -> (i32, i32) {
    %c0_i32 = arith.constant 0 : i32
    %c0_i32_0 = arith.constant 0 : i32
    %c0_i32_1 = arith.constant 0 : i32
    return %c0_i32, %c0_i32_0 : i32, i32
  }
  func.func @transform_2(%arg0: i32) -> (i32, i32) {
    %c0_i32 = arith.constant 0 : i32
    %c0_i32_0 = arith.constant 0 : i32
    %c0_i32_1 = arith.constant 0 : i32
    return %c0_i32, %c0_i32_0 : i32, i32
  }
  func.func @transform_3(%arg0: i32) -> (i32, i32) {
    %c0_i32 = arith.constant 0 : i32
    %c0_i32_0 = arith.constant 0 : i32
    %c0_i32_1 = arith.constant 0 : i32
    return %c0_i32, %c0_i32_0 : i32, i32
  }
  func.func @transform_4(%arg0: i32) -> (i32, i32) {
    %c0_i32 = arith.constant 0 : i32
    %c0_i32_0 = arith.constant 0 : i32
    %c0_i32_1 = arith.constant 0 : i32
    return %c0_i32, %c0_i32_0 : i32, i32
  }
  func.func @transform_5(%arg0: i32) -> (i32, i32) {
    %c0_i32 = arith.constant 0 : i32
    %c0_i32_0 = arith.constant 0 : i32
    %c0_i32_1 = arith.constant 0 : i32
    return %c0_i32, %c0_i32_0 : i32, i32
  }
  func.func @transform_6(%arg0: i32) -> (i32, i32) {
    %c0_i32 = arith.constant 0 : i32
    %c0_i32_0 = arith.constant 0 : i32
    %c0_i32_1 = arith.constant 0 : i32
    return %c0_i32, %c0_i32_0 : i32, i32
  }
  func.func @transform_7(%arg0: i32) -> (i32, i32) {
    %c0_i32 = arith.constant 0 : i32
    %c0_i32_0 = arith.constant 0 : i32
    return %arg0, %c0_i32 : i32, i32
  }
}

</mosaic_0001>

<llo_original>
// kernel: tpu_custom_call.1
$region0: #{tpu_custom_call.1}
  #allocation0 [shape = 'u32[]', space=smem, size = 0x4, offset = 0x4, fixed_abs, tag = 'smem constant byte address 0x4 - core index']
  #allocation1 [shape = 'u32[72,128]{1,0:T(1,128)}', space=vmem, size = 0x9000, scoped, tag = 'internal scratch']
  #allocation2 [shape = 'f32[1,1]{1,0:T(1,128)S(1)}', space=vmem, size = 0x200, scoped, tag = 'scoped memory for tpu_custom_call.1']
  %s0 = inlined_call_operand.hbm [shape: f32[256,256], index: 0, kind: input, shape index: {}]
  %s1 = inlined_call_operand.hbm [shape: bf16[256,128], index: 1, kind: input, shape index: {}]
  %s2 = inlined_call_operand.vmem [shape: f32[1,128], index: 2, kind: input, shape index: {}]
  %s3 = inlined_call_operand.vmem [shape: bf16[128,128], index: 3, kind: input, shape index: {}]
  %s4 = inlined_call_operand.vmem [shape: f32[1,128], index: 4, kind: input, shape index: {}]
  %s5 = inlined_call_operand.vmem [shape: bf16[128,1], index: 5, kind: input, shape index: {}]
  %s6 = inlined_call_operand.<no memory space> [shape: f32[1,1], index: 6, kind: input, shape index: {}]
  %s7 = inlined_call_operand.vmem [shape: f32[256,1], index: 7, kind: output, shape index: {}]
  %s8 = sld [smem:[#allocation0]]
  $region46: #{tpu_custom_call.1} parent=0
    _
  %s10 = ssub.s32 1, %s8
  %s11 = scalar_select 0, %s10, %s8
  %v12 = vstv %s6
  %13 = vst [vmem:[#allocation2] sm:$0x1] %v12
  $region1: #{tpu_custom_call.1} parent=0
    #allocation3 [shape = 'u8[262144]{0}', space=vmem, size = 0x40000, scoped, tag = 'input window, operand 0, single buffered']
    #allocation4 [shape = 's32[1]{0}', space=sflag, size = 0x4, scoped, tag = 'scoped memory for tpu_custom_call.1']
    #allocation5 [shape = 'u8[65536]{0}', space=vmem, size = 0x10000, scoped, tag = 'input window, operand 1, single buffered']
    #allocation6 [shape = 's32[1]{0}', space=sflag, size = 0x4, scoped, tag = 'scoped memory for tpu_custom_call.1']
    %14 = vsyncpa [#allocation4], 0
    %15 = vsyncpa [#allocation6], 0
    // Predicated region
    $region2: #{tpu_custom_call.1} parent=1 // pred_check
      _
    $region3: #{tpu_custom_call.1} parent=1 // pred_check_branch
      %17 = sbr.rel (0) target = $region5
    $region4: #{tpu_custom_call.1} parent=1 // pred_region
      %19 = vsyncadd [#allocation4], 0
      %s20 = sshll.u32 %s0, 4
      %s21 = int_to_ptr.hbm [resolvable:$true] %s20
      %s22 = sshll.u32 [#allocation3], 4
      %s23 = int_to_ptr.vmem [resolvable:$true] %s22
      %28 = dma.hbm_to_vmem [thread:$0]  %s21, 8192, %s23, [#allocation4], 256, 256, 16
    $region5: #{tpu_custom_call.1} parent=1 // pred_fallthru
      _
    // Predicated region
    $region6: #{tpu_custom_call.1} parent=1 // pred_check
      _
    $region7: #{tpu_custom_call.1} parent=1 // pred_check_branch
      %30 = sbr.rel (0) target = $region9
    $region8: #{tpu_custom_call.1} parent=1 // pred_region
      %32 = vsyncadd [#allocation6], 0
      %s33 = sshll.u32 %s1, 4
      %s34 = int_to_ptr.hbm [resolvable:$true] %s33
      %s35 = sshll.u32 [#allocation5], 4
      %s36 = int_to_ptr.vmem [resolvable:$true] %s35
      %41 = dma.hbm_to_vmem [thread:$0]  %s34, 2048, %s36, [#allocation6], 64, 64, 4
    $region9: #{tpu_custom_call.1} parent=1 // pred_fallthru
      _
    // Predicated region
    $region10: #{tpu_custom_call.1} parent=1 // pred_check
      _
    $region11: #{tpu_custom_call.1} parent=1 // pred_check_branch
      %43 = sbr.rel (0) target = $region13
    $region12: #{tpu_custom_call.1} parent=1 // pred_region
      _
    $region13: #{tpu_custom_call.1} parent=1 // pred_fallthru
      _
    // Predicated region
    $region14: #{tpu_custom_call.1} parent=1 // pred_check
      _
    $region15: #{tpu_custom_call.1} parent=1 // pred_check_branch
      %45 = sbr.rel (0) target = $region17
    $region16: #{tpu_custom_call.1} parent=1 // pred_region
      _
    $region17: #{tpu_custom_call.1} parent=1 // pred_fallthru
      _
    // Predicated region
    $region18: #{tpu_custom_call.1} parent=1 // pred_check
      _
    $region19: #{tpu_custom_call.1} parent=1 // pred_check_branch
      %47 = sbr.rel (0) target = $region21
    $region20: #{tpu_custom_call.1} parent=1 // pred_region
      _
    $region21: #{tpu_custom_call.1} parent=1 // pred_fallthru
      _
    // Predicated region
    $region22: #{tpu_custom_call.1} parent=1 // pred_check
      _
    $region23: #{tpu_custom_call.1} parent=1 // pred_check_branch
      %49 = sbr.rel (0) target = $region25
    $region24: #{tpu_custom_call.1} parent=1 // pred_region
      _
    $region25: #{tpu_custom_call.1} parent=1 // pred_fallthru
      _
    // Predicated region
    $region26: #{tpu_custom_call.1} parent=1 // pred_check
      _
    $region27: #{tpu_custom_call.1} parent=1 // pred_check_branch
      %51 = sbr.rel (0) target = $region29
    $region28: #{tpu_custom_call.1} parent=1 // pred_region
      _
    $region29: #{tpu_custom_call.1} parent=1 // pred_fallthru
      _
    // Predicated region
    $region30: #{tpu_custom_call.1} parent=1 // pred_check
      _
    $region31: #{tpu_custom_call.1} parent=1 // pred_check_branch
      %53 = sbr.rel (0) target = $region33
    $region32: #{tpu_custom_call.1} parent=1 // pred_region
      %55 = dma.done [#allocation4], 8192
    $region33: #{tpu_custom_call.1} parent=1 // pred_fallthru
      _
    // Predicated region
    $region34: #{tpu_custom_call.1} parent=1 // pred_check
      _
    $region35: #{tpu_custom_call.1} parent=1 // pred_check_branch
      %57 = sbr.rel (0) target = $region37
    $region36: #{tpu_custom_call.1} parent=1 // pred_region
      %59 = dma.done [#allocation6], 2048
    $region37: #{tpu_custom_call.1} parent=1 // pred_fallthru
      _
    %v60 = vld [vmem:[#allocation3] sm:$0xff]
    %v61 = vld [vmem:[#allocation3 + $0x8] sm:$0xff]
    %v62 = vld [vmem:[#allocation3 + $0x10] sm:$0xff]
    %v63 = vld [vmem:[#allocation3 + $0x18] sm:$0xff]
    %v64 = vld [vmem:[#allocation3 + $0x20] sm:$0xff]
    %v65 = vld [vmem:[#allocation3 + $0x28] sm:$0xff]
    %v66 = vld [vmem:[#allocation3 + $0x30] sm:$0xff]
    %v67 = vld [vmem:[#allocation3 + $0x38] sm:$0xff]
    %v68 = vld [vmem:[#allocation3 + $0x40] sm:$0xff]
    %v69 = vld [vmem:[#allocation3 + $0x48] sm:$0xff]
    %v70 = vld [vmem:[#allocation3 + $0x50] sm:$0xff]
    %v71 = vld [vmem:[#allocation3 + $0x58] sm:$0xff]
    %v72 = vld [vmem:[#allocation3 + $0x60] sm:$0xff]
    %v73 = vld [vmem:[#allocation3 + $0x68] sm:$0xff]
    %v74 = vld [vmem:[#allocation3 + $0x70] sm:$0xff]
    %v75 = vld [vmem:[#allocation3 + $0x78] sm:$0xff]
    %v76 = vld [vmem:[#allocation3 + $0x80] sm:$0xff]
    %v77 = vld [vmem:[#allocation3 + $0x88] sm:$0xff]
    %v78 = vld [vmem:[#allocation3 + $0x90] sm:$0xff]
    %v79 = vld [vmem:[#allocation3 + $0x98] sm:$0xff]
    %v80 = vld [vmem:[#allocation3 + $0xa0] sm:$0xff]
    %v81 = vld [vmem:[#allocation3 + $0xa8] sm:$0xff]
    %v82 = vld [vmem:[#allocation3 + $0xb0] sm:$0xff]
    %v83 = vld [vmem:[#allocation3 + $0xb8] sm:$0xff]
    %v84 = vld [vmem:[#allocation3 + $0xc0] sm:$0xff]
    %v85 = vld [vmem:[#allocation3 + $0xc8] sm:$0xff]
    %v86 = vld [vmem:[#allocation3 + $0xd0] sm:$0xff]
    %v87 = vld [vmem:[#allocation3 + $0xd8] sm:$0xff]
    %v88 = vld [vmem:[#allocation3 + $0xe0] sm:$0xff]
    %v89 = vld [vmem:[#allocation3 + $0xe8] sm:$0xff]
    %v90 = vld [vmem:[#allocation3 + $0xf0] sm:$0xff]
    %v91 = vld [vmem:[#allocation3 + $0xf8] sm:$0xff]
    %v92 = vld [vmem:[#allocation3 + $0x100] sm:$0xff]
    %v93 = vld [vmem:[#allocation3 + $0x108] sm:$0xff]
    %v94 = vld [vmem:[#allocation3 + $0x110] sm:$0xff]
    %v95 = vld [vmem:[#allocation3 + $0x118] sm:$0xff]
    %v96 = vld [vmem:[#allocation3 + $0x120] sm:$0xff]
    %v97 = vld [vmem:[#allocation3 + $0x128] sm:$0xff]
    %v98 = vld [vmem:[#allocation3 + $0x130] sm:$0xff]
    %v99 = vld [vmem:[#allocation3 + $0x138] sm:$0xff]
    %v100 = vld [vmem:[#allocation3 + $0x140] sm:$0xff]
    %v101 = vld [vmem:[#allocation3 + $0x148] sm:$0xff]
    %v102 = vld [vmem:[#allocation3 + $0x150] sm:$0xff]
    %v103 = vld [vmem:[#allocation3 + $0x158] sm:$0xff]
    %v104 = vld [vmem:[#allocation3 + $0x160] sm:$0xff]
    %v105 = vld [vmem:[#allocation3 + $0x168] sm:$0xff]
    %v106 = vld [vmem:[#allocation3 + $0x170] sm:$0xff]
    %v107 = vld [vmem:[#allocation3 + $0x178] sm:$0xff]
    %v108 = vld [vmem:[#allocation3 + $0x180] sm:$0xff]
    %v109 = vld [vmem:[#allocation3 + $0x188] sm:$0xff]
    %v110 = vld [vmem:[#allocation3 + $0x190] sm:$0xff]
    %v111 = vld [vmem:[#allocation3 + $0x198] sm:$0xff]
    %v112 = vld [vmem:[#allocation3 + $0x1a0] sm:$0xff]
    %v113 = vld [vmem:[#allocation3 + $0x1a8] sm:$0xff]
    %v114 = vld [vmem:[#allocation3 + $0x1b0] sm:$0xff]
    %v115 = vld [vmem:[#allocation3 + $0x1b8] sm:$0xff]
    %v116 = vld [vmem:[#allocation3 + $0x1c0] sm:$0xff]
    %v117 = vld [vmem:[#allocation3 + $0x1c8] sm:$0xff]
    %v118 = vld [vmem:[#allocation3 + $0x1d0] sm:$0xff]
    %v119 = vld [vmem:[#allocation3 + $0x1d8] sm:$0xff]
    %v120 = vld [vmem:[#allocation3 + $0x1e0] sm:$0xff]
    %v121 = vld [vmem:[#allocation3 + $0x1e8] sm:$0xff]
    %v122 = vld [vmem:[#allocation3 + $0x1f0] sm:$0xff]
    %v123 = vld [vmem:[#allocation3 + $0x1f8] sm:$0xff]
    %v124 = vpack.c.bf16 %v62, %v60
    %v125 = vpack.c.bf16 %v63, %v61
    %v126 = vpack.c.bf16 %v66, %v64
    %v127 = vpack.c.bf16 %v67, %v65
    %v128 = vpack.c.bf16 %v70, %v68
    %v129 = vpack.c.bf16 %v71, %v69
    %v130 = vpack.c.bf16 %v74, %v72
    %v131 = vpack.c.bf16 %v75, %v73
    %v132 = vpack.c.bf16 %v78, %v76
    %v133 = vpack.c.bf16 %v79, %v77
    %v134 = vpack.c.bf16 %v82, %v80
    %v135 = vpack.c.bf16 %v83, %v81
    %v136 = vpack.c.bf16 %v86, %v84
    %v137 = vpack.c.bf16 %v87, %v85
    %v138 = vpack.c.bf16 %v90, %v88
    %v139 = vpack.c.bf16 %v91, %v89
    %v140 = vpack.c.bf16 %v94, %v92
    %v141 = vpack.c.bf16 %v95, %v93
    %v142 = vpack.c.bf16 %v98, %v96
    %v143 = vpack.c.bf16 %v99, %v97
    %v144 = vpack.c.bf16 %v102, %v100
    %v145 = vpack.c.bf16 %v103, %v101
    %v146 = vpack.c.bf16 %v106, %v104
    %v147 = vpack.c.bf16 %v107, %v105
    %v148 = vpack.c.bf16 %v110, %v108
    %v149 = vpack.c.bf16 %v111, %v109
    %v150 = vpack.c.bf16 %v114, %v112
    %v151 = vpack.c.bf16 %v115, %v113
    %v152 = vpack.c.bf16 %v118, %v116
    %v153 = vpack.c.bf16 %v119, %v117
    %v154 = vpack.c.bf16 %v122, %v120
    %v155 = vpack.c.bf16 %v123, %v121
    %v156 = vld [vmem:[#allocation5] sm:$0xf]
    %v157 = vld [vmem:[#allocation5 + $0x4] sm:$0xf]
    %v158 = vld [vmem:[#allocation5 + $0x8] sm:$0xf]
    %v159 = vld [vmem:[#allocation5 + $0xc] sm:$0xf]
    %v160 = vld [vmem:[#allocation5 + $0x10] sm:$0xf]
    %v161 = vld [vmem:[#allocation5 + $0x14] sm:$0xf]
    %v162 = vld [vmem:[#allocation5 + $0x18] sm:$0xf]
    %v163 = vld [vmem:[#allocation5 + $0x1c] sm:$0xf]
    %v164 = vld [vmem:[#allocation5 + $0x20] sm:$0xf]
    %v165 = vld [vmem:[#allocation5 + $0x24] sm:$0xf]
    %v166 = vld [vmem:[#allocation5 + $0x28] sm:$0xf]
    %v167 = vld [vmem:[#allocation5 + $0x2c] sm:$0xf]
    %v168 = vld [vmem:[#allocation5 + $0x30] sm:$0xf]
    %v169 = vld [vmem:[#allocation5 + $0x34] sm:$0xf]
    %v170 = vld [vmem:[#allocation5 + $0x38] sm:$0xf]
    %v171 = vld [vmem:[#allocation5 + $0x3c] sm:$0xf]
    %v172 = vld [vmem:[#allocation5 + $0x40] sm:$0xf]
    %v173 = vld [vmem:[#allocation5 + $0x44] sm:$0xf]
    %v174 = vld [vmem:[#allocation5 + $0x48] sm:$0xf]
    %v175 = vld [vmem:[#allocation5 + $0x4c] sm:$0xf]
    %v176 = vld [vmem:[#allocation5 + $0x50] sm:$0xf]
    %v177 = vld [vmem:[#allocation5 + $0x54] sm:$0xf]
    %v178 = vld [vmem:[#allocation5 + $0x58] sm:$0xf]
    %v179 = vld [vmem:[#allocation5 + $0x5c] sm:$0xf]
    %v180 = vld [vmem:[#allocation5 + $0x60] sm:$0xf]
    %v181 = vld [vmem:[#allocation5 + $0x64] sm:$0xf]
    %v182 = vld [vmem:[#allocation5 + $0x68] sm:$0xf]
    %v183 = vld [vmem:[#allocation5 + $0x6c] sm:$0xf]
    %v184 = vld [vmem:[#allocation5 + $0x70] sm:$0xf]
    %v185 = vld [vmem:[#allocation5 + $0x74] sm:$0xf]
    %v186 = vld [vmem:[#allocation5 + $0x78] sm:$0xf]
    %v187 = vld [vmem:[#allocation5 + $0x7c] sm:$0xf]
    %v188 = vld [vmem:[%s2] sm:$0x1]
    %v190 = vperm.slane %v188, 0
    %v224 = vunpack.c.l.b16 %v156
    %v225 = vunpack.c.l.b16 %v157
    %v226 = vunpack.c.l.b16 %v158
    %v227 = vunpack.c.l.b16 %v159
    %v228 = vunpack.c.l.b16 %v160
    %v229 = vunpack.c.l.b16 %v161
    %v230 = vunpack.c.l.b16 %v162
    %v231 = vunpack.c.l.b16 %v163
    %v232 = vunpack.c.l.b16 %v164
    %v233 = vunpack.c.l.b16 %v165
    %v234 = vunpack.c.l.b16 %v166
    %v235 = vunpack.c.l.b16 %v167
    %v236 = vunpack.c.l.b16 %v168
    %v237 = vunpack.c.l.b16 %v169
    %v238 = vunpack.c.l.b16 %v170
    %v239 = vunpack.c.l.b16 %v171
    %v240 = vunpack.c.l.b16 %v172
    %v241 = vunpack.c.l.b16 %v173
    %v242 = vunpack.c.l.b16 %v174
    %v243 = vunpack.c.l.b16 %v175
    %v244 = vunpack.c.l.b16 %v176
    %v245 = vunpack.c.l.b16 %v177
    %v246 = vunpack.c.l.b16 %v178
    %v247 = vunpack.c.l.b16 %v179
    %v248 = vunpack.c.l.b16 %v180
    %v249 = vunpack.c.l.b16 %v181
    %v250 = vunpack.c.l.b16 %v182
    %v251 = vunpack.c.l.b16 %v183
    %v252 = vunpack.c.l.b16 %v184
    %v253 = vunpack.c.l.b16 %v185
    %v254 = vunpack.c.l.b16 %v186
    %v255 = vunpack.c.l.b16 %v187
    %v256 = vpack.c.b16 %v225, %v224
    %v257 = vpack.c.b16 %v227, %v226
    %v258 = vpack.c.b16 %v229, %v228
    %v259 = vpack.c.b16 %v231, %v230
    %v260 = vpack.c.b16 %v233, %v232
    %v261 = vpack.c.b16 %v235, %v234
    %v262 = vpack.c.b16 %v237, %v236
    %v263 = vpack.c.b16 %v239, %v238
    %v264 = vpack.c.b16 %v241, %v240
    %v265 = vpack.c.b16 %v243, %v242
    %v266 = vpack.c.b16 %v245, %v244
    %v267 = vpack.c.b16 %v247, %v246
    %v268 = vpack.c.b16 %v249, %v248
    %v269 = vpack.c.b16 %v251, %v250
    %v270 = vpack.c.b16 %v253, %v252
    %v271 = vpack.c.b16 %v255, %v254
    %288 = vmatpush.bf16.msra.mxu0 %v263
    %289 = vmatpush.bf16.msra.mxu0 %v262
    %290 = vmatpush.bf16.msra.mxu0 %v261
    %291 = vmatpush.bf16.msra.mxu0 %v260
    %292 = vmatpush.bf16.msra.mxu0 %v259
    %293 = vmatpush.bf16.msra.mxu0 %v258
    %294 = vmatpush.bf16.msra.mxu0 %v257
    %295 = vmatpush.bf16.msra.mxu0 %v256
    %296 = vmatmul.bf16.gmra.mxu0 %v124
    %v297 = vpop.f32.mrf.mxu0
    %v298 = vadd.f32 %v190, %v297
    %v299 = vpop.f32.mrf.mxu0
    %v300 = vadd.f32 %v190, %v299
    %301 = vmatmul.bf16.gmra.mxu0 %v126
    %v302 = vpop.f32.mrf.mxu0
    %v303 = vadd.f32 %v190, %v302
    %v304 = vpop.f32.mrf.mxu0
    %v305 = vadd.f32 %v190, %v304
    %306 = vmatmul.bf16.gmra.mxu0 %v128
    %v307 = vpop.f32.mrf.mxu0
    %v308 = vadd.f32 %v190, %v307
    %v309 = vpop.f32.mrf.mxu0
    %v310 = vadd.f32 %v190, %v309
    %311 = vmatmul.bf16.gmra.mxu0 %v130
    %v312 = vpop.f32.mrf.mxu0
    %v313 = vadd.f32 %v190, %v312
    %v314 = vpop.f32.mrf.mxu0
    %v315 = vadd.f32 %v190, %v314
    %316 = vmatmul.bf16.gmra.mxu0 %v132
    %v317 = vpop.f32.mrf.mxu0
    %v318 = vadd.f32 %v190, %v317
    %v319 = vpop.f32.mrf.mxu0
    %v320 = vadd.f32 %v190, %v319
    %321 = vmatmul.bf16.gmra.mxu0 %v134
    %v322 = vpop.f32.mrf.mxu0
    %v323 = vadd.f32 %v190, %v322
    %v324 = vpop.f32.mrf.mxu0
    %v325 = vadd.f32 %v190, %v324
    %326 = vmatmul.bf16.gmra.mxu0 %v136
    %v327 = vpop.f32.mrf.mxu0
    %v328 = vadd.f32 %v190, %v327
    %v329 = vpop.f32.mrf.mxu0
    %v330 = vadd.f32 %v190, %v329
    %331 = vmatmul.bf16.gmra.mxu0 %v138
    %v332 = vpop.f32.mrf.mxu0
    %v333 = vadd.f32 %v190, %v332
    %v334 = vpop.f32.mrf.mxu0
    %v335 = vadd.f32 %v190, %v334
    %336 = vmatmul.bf16.gmra.mxu0 %v140
    %v337 = vpop.f32.mrf.mxu0
    %v338 = vadd.f32 %v190, %v337
    %v339 = vpop.f32.mrf.mxu0
    %v340 = vadd.f32 %v190, %v339
    %341 = vmatmul.bf16.gmra.mxu0 %v142
    %v342 = vpop.f32.mrf.mxu0
    %v343 = vadd.f32 %v190, %v342
    %v344 = vpop.f32.mrf.mxu0
    %v345 = vadd.f32 %v190, %v344
    %346 = vmatmul.bf16.gmra.mxu0 %v144
    %v347 = vpop.f32.mrf.mxu0
    %v348 = vadd.f32 %v190, %v347
    %v349 = vpop.f32.mrf.mxu0
    %v350 = vadd.f32 %v190, %v349
    %351 = vmatmul.bf16.gmra.mxu0 %v146
    %v352 = vpop.f32.mrf.mxu0
    %v353 = vadd.f32 %v190, %v352
    %v354 = vpop.f32.mrf.mxu0
    %v355 = vadd.f32 %v190, %v354
    %356 = vmatmul.bf16.gmra.mxu0 %v148
    %v357 = vpop.f32.mrf.mxu0
    %v358 = vadd.f32 %v190, %v357
    %v359 = vpop.f32.mrf.mxu0
    %v360 = vadd.f32 %v190, %v359
    %361 = vmatmul.bf16.gmra.mxu0 %v150
    %v362 = vpop.f32.mrf.mxu0
    %v363 = vadd.f32 %v190, %v362
    %v364 = vpop.f32.mrf.mxu0
    %v365 = vadd.f32 %v190, %v364
    %366 = vmatmul.bf16.gmra.mxu0 %v152
    %v367 = vpop.f32.mrf.mxu0
    %v368 = vadd.f32 %v190, %v367
    %v369 = vpop.f32.mrf.mxu0
    %v370 = vadd.f32 %v190, %v369
    %371 = vmatmul.bf16.gmra.mxu0 %v154
    %v372 = vpop.f32.mrf.mxu0
    %v373 = vadd.f32 %v190, %v372
    %v374 = vpop.f32.mrf.mxu0
    %v375 = vadd.f32 %v190, %v374
    %376 = vdwg.mxu0
    %377 = vmatpush.bf16.msra.mxu0 %v271
    %378 = vmatpush.bf16.msra.mxu0 %v270
    %379 = vmatpush.bf16.msra.mxu0 %v269
    %380 = vmatpush.bf16.msra.mxu0 %v268
    %381 = vmatpush.bf16.msra.mxu0 %v267
    %382 = vmatpush.bf16.msra.mxu0 %v266
    %383 = vmatpush.bf16.msra.mxu0 %v265
    %384 = vmatpush.bf16.msra.mxu0 %v264
    %385 = vmatmul.bf16.gmra.mxu0 %v125
    %v386 = vpop.f32.mrf.mxu0
    %v387 = vadd.f32 %v298, %v386
    %v388 = vpop.f32.mrf.mxu0
    %v389 = vadd.f32 %v300, %v388
    %390 = vmatmul.bf16.gmra.mxu0 %v127
    %v391 = vpop.f32.mrf.mxu0
    %v392 = vadd.f32 %v303, %v391
    %v393 = vpop.f32.mrf.mxu0
    %v394 = vadd.f32 %v305, %v393
    %395 = vmatmul.bf16.gmra.mxu0 %v129
    %v396 = vpop.f32.mrf.mxu0
    %v397 = vadd.f32 %v308, %v396
    %v398 = vpop.f32.mrf.mxu0
    %v399 = vadd.f32 %v310, %v398
    %400 = vmatmul.bf16.gmra.mxu0 %v131
    %v401 = vpop.f32.mrf.mxu0
    %v402 = vadd.f32 %v313, %v401
    %v403 = vpop.f32.mrf.mxu0
    %v404 = vadd.f32 %v315, %v403
    %405 = vmatmul.bf16.gmra.mxu0 %v133
    %v406 = vpop.f32.mrf.mxu0
    %v407 = vadd.f32 %v318, %v406
    %v408 = vpop.f32.mrf.mxu0
    %v409 = vadd.f32 %v320, %v408
    %410 = vmatmul.bf16.gmra.mxu0 %v135
    %v411 = vpop.f32.mrf.mxu0
    %v412 = vadd.f32 %v323, %v411
    %v413 = vpop.f32.mrf.mxu0
    %v414 = vadd.f32 %v325, %v413
    %415 = vmatmul.bf16.gmra.mxu0 %v137
    %v416 = vpop.f32.mrf.mxu0
    %v417 = vadd.f32 %v328, %v416
    %v418 = vpop.f32.mrf.mxu0
    %v419 = vadd.f32 %v330, %v418
    %420 = vmatmul.bf16.gmra.mxu0 %v139
    %v421 = vpop.f32.mrf.mxu0
    %v422 = vadd.f32 %v333, %v421
    %v423 = vpop.f32.mrf.mxu0
    %v424 = vadd.f32 %v335, %v423
    %425 = vmatmul.bf16.gmra.mxu0 %v141
    %v426 = vpop.f32.mrf.mxu0
    %v427 = vadd.f32 %v338, %v426
    %v428 = vpop.f32.mrf.mxu0
    %v429 = vadd.f32 %v340, %v428
    %430 = vmatmul.bf16.gmra.mxu0 %v143
    %v431 = vpop.f32.mrf.mxu0
    %v432 = vadd.f32 %v343, %v431
    %v433 = vpop.f32.mrf.mxu0
    %v434 = vadd.f32 %v345, %v433
    %435 = vmatmul.bf16.gmra.mxu0 %v145
    %v436 = vpop.f32.mrf.mxu0
    %v437 = vadd.f32 %v348, %v436
    %v438 = vpop.f32.mrf.mxu0
    %v439 = vadd.f32 %v350, %v438
    %440 = vmatmul.bf16.gmra.mxu0 %v147
    %v441 = vpop.f32.mrf.mxu0
    %v442 = vadd.f32 %v353, %v441
    %v443 = vpop.f32.mrf.mxu0
    %v444 = vadd.f32 %v355, %v443
    %445 = vmatmul.bf16.gmra.mxu0 %v149
    %v446 = vpop.f32.mrf.mxu0
    %v447 = vadd.f32 %v358, %v446
    %v448 = vpop.f32.mrf.mxu0
    %v449 = vadd.f32 %v360, %v448
    %450 = vmatmul.bf16.gmra.mxu0 %v151
    %v451 = vpop.f32.mrf.mxu0
    %v452 = vadd.f32 %v363, %v451
    %v453 = vpop.f32.mrf.mxu0
    %v454 = vadd.f32 %v365, %v453
    %455 = vmatmul.bf16.gmra.mxu0 %v153
    %v456 = vpop.f32.mrf.mxu0
    %v457 = vadd.f32 %v368, %v456
    %v458 = vpop.f32.mrf.mxu0
    %v459 = vadd.f32 %v370, %v458
    %460 = vmatmul.bf16.gmra.mxu0 %v155
    %v461 = vpop.f32.mrf.mxu0
    %v462 = vadd.f32 %v373, %v461
    %v463 = vpop.f32.mrf.mxu0
    %v464 = vadd.f32 %v375, %v463
    %465 = vdwg.mxu0
    %v466 = vmul.f32 %v387, 0.2
    %v467 = vmul.f32 %v389, 0.2
    %v468 = vmul.f32 %v392, 0.2
    %v469 = vmul.f32 %v394, 0.2
    %v470 = vmul.f32 %v397, 0.2
    %v471 = vmul.f32 %v399, 0.2
    %v472 = vmul.f32 %v402, 0.2
    %v473 = vmul.f32 %v404, 0.2
    %v474 = vmul.f32 %v407, 0.2
    %v475 = vmul.f32 %v409, 0.2
    %v476 = vmul.f32 %v412, 0.2
    %v477 = vmul.f32 %v414, 0.2
    %v478 = vmul.f32 %v417, 0.2
    %v479 = vmul.f32 %v419, 0.2
    %v480 = vmul.f32 %v422, 0.2
    %v481 = vmul.f32 %v424, 0.2
    %v482 = vmul.f32 %v427, 0.2
    %v483 = vmul.f32 %v429, 0.2
    %v484 = vmul.f32 %v432, 0.2
    %v485 = vmul.f32 %v434, 0.2
    %v486 = vmul.f32 %v437, 0.2
    %v487 = vmul.f32 %v439, 0.2
    %v488 = vmul.f32 %v442, 0.2
    %v489 = vmul.f32 %v444, 0.2
    %v490 = vmul.f32 %v447, 0.2
    %v491 = vmul.f32 %v449, 0.2
    %v492 = vmul.f32 %v452, 0.2
    %v493 = vmul.f32 %v454, 0.2
    %v494 = vmul.f32 %v457, 0.2
    %v495 = vmul.f32 %v459, 0.2
    %v496 = vmul.f32 %v462, 0.2
    %v497 = vmul.f32 %v464, 0.2
    %v498 = vmax.f32 %v387, %v466
    %v499 = vmax.f32 %v389, %v467
    %v500 = vmax.f32 %v392, %v468
    %v501 = vmax.f32 %v394, %v469
    %v502 = vmax.f32 %v397, %v470
    %v503 = vmax.f32 %v399, %v471
    %v504 = vmax.f32 %v402, %v472
    %v505 = vmax.f32 %v404, %v473
    %v506 = vmax.f32 %v407, %v474
    %v507 = vmax.f32 %v409, %v475
    %v508 = vmax.f32 %v412, %v476
    %v509 = vmax.f32 %v414, %v477
    %v510 = vmax.f32 %v417, %v478
    %v511 = vmax.f32 %v419, %v479
    %v512 = vmax.f32 %v422, %v480
    %v513 = vmax.f32 %v424, %v481
    %v514 = vmax.f32 %v427, %v482
    %v515 = vmax.f32 %v429, %v483
    %v516 = vmax.f32 %v432, %v484
    %v517 = vmax.f32 %v434, %v485
    %v518 = vmax.f32 %v437, %v486
    %v519 = vmax.f32 %v439, %v487
    %v520 = vmax.f32 %v442, %v488
    %v521 = vmax.f32 %v444, %v489
    %v522 = vmax.f32 %v447, %v490
    %v523 = vmax.f32 %v449, %v491
    %v524 = vmax.f32 %v452, %v492
    %v525 = vmax.f32 %v454, %v493
    %v526 = vmax.f32 %v457, %v494
    %v527 = vmax.f32 %v459, %v495
    %v528 = vmax.f32 %v462, %v496
    %v529 = vmax.f32 %v464, %v497
    %v530 = vpack.c.bf16 %v499, %v498
    %v531 = vpack.c.bf16 %v501, %v500
    %v532 = vpack.c.bf16 %v503, %v502
    %v533 = vpack.c.bf16 %v505, %v504
    %v534 = vpack.c.bf16 %v507, %v506
    %v535 = vpack.c.bf16 %v509, %v508
    %v536 = vpack.c.bf16 %v511, %v510
    %v537 = vpack.c.bf16 %v513, %v512
    %v538 = vpack.c.bf16 %v515, %v514
    %v539 = vpack.c.bf16 %v517, %v516
    %v540 = vpack.c.bf16 %v519, %v518
    %v541 = vpack.c.bf16 %v521, %v520
    %v542 = vpack.c.bf16 %v523, %v522
    %v543 = vpack.c.bf16 %v525, %v524
    %v544 = vpack.c.bf16 %v527, %v526
    %v545 = vpack.c.bf16 %v529, %v528
    %v546 = vld [vmem:[%s3] sm:$0xf]
    %v547 = vld [vmem:[%s3 + $0x4] sm:$0xf]
    %v548 = vld [vmem:[%s3 + $0x8] sm:$0xf]
    %v549 = vld [vmem:[%s3 + $0xc] sm:$0xf]
    %v550 = vld [vmem:[%s3 + $0x10] sm:$0xf]
    %v551 = vld [vmem:[%s3 + $0x14] sm:$0xf]
    %v552 = vld [vmem:[%s3 + $0x18] sm:$0xf]
    %v553 = vld [vmem:[%s3 + $0x1c] sm:$0xf]
    %v554 = vld [vmem:[%s3 + $0x20] sm:$0xf]
    %v555 = vld [vmem:[%s3 + $0x24] sm:$0xf]
    %v556 = vld [vmem:[%s3 + $0x28] sm:$0xf]
    %v557 = vld [vmem:[%s3 + $0x2c] sm:$0xf]
    %v558 = vld [vmem:[%s3 + $0x30] sm:$0xf]
    %v559 = vld [vmem:[%s3 + $0x34] sm:$0xf]
    %v560 = vld [vmem:[%s3 + $0x38] sm:$0xf]
    %v561 = vld [vmem:[%s3 + $0x3c] sm:$0xf]
    %v562 = vld [vmem:[%s4] sm:$0x1]
    %v564 = vperm.slane %v562, 0
    %v582 = vunpack.c.l.b16 %v546
    %v583 = vunpack.c.l.b16 %v547
    %v584 = vunpack.c.l.b16 %v548
    %v585 = vunpack.c.l.b16 %v549
    %v586 = vunpack.c.l.b16 %v550
    %v587 = vunpack.c.l.b16 %v551
    %v588 = vunpack.c.l.b16 %v552
    %v589 = vunpack.c.l.b16 %v553
    %v590 = vunpack.c.l.b16 %v554
    %v591 = vunpack.c.l.b16 %v555
    %v592 = vunpack.c.l.b16 %v556
    %v593 = vunpack.c.l.b16 %v557
    %v594 = vunpack.c.l.b16 %v558
    %v595 = vunpack.c.l.b16 %v559
    %v596 = vunpack.c.l.b16 %v560
    %v597 = vunpack.c.l.b16 %v561
    %v598 = vpack.c.b16 %v583, %v582
    %v599 = vpack.c.b16 %v585, %v584
    %v600 = vpack.c.b16 %v587, %v586
    %v601 = vpack.c.b16 %v589, %v588
    %v602 = vpack.c.b16 %v591, %v590
    %v603 = vpack.c.b16 %v593, %v592
    %v604 = vpack.c.b16 %v595, %v594
    %v605 = vpack.c.b16 %v597, %v596
    %614 = vmatpush.bf16.msra.mxu0 %v605
    %615 = vmatpush.bf16.msra.mxu0 %v604
    %616 = vmatpush.bf16.msra.mxu0 %v603
    %617 = vmatpush.bf16.msra.mxu0 %v602
    %618 = vmatpush.bf16.msra.mxu0 %v601
    %619 = vmatpush.bf16.msra.mxu0 %v600
    %620 = vmatpush.bf16.msra.mxu0 %v599
    %621 = vmatpush.bf16.msra.mxu0 %v598
    %622 = vmatmul.bf16.gmra.mxu0 %v530
    %v623 = vpop.f32.mrf.mxu0
    %v624 = vadd.f32 %v564, %v623
    %v625 = vpop.f32.mrf.mxu0
    %v626 = vadd.f32 %v564, %v625
    %627 = vmatmul.bf16.gmra.mxu0 %v531
    %v628 = vpop.f32.mrf.mxu0
    %v629 = vadd.f32 %v564, %v628
    %v630 = vpop.f32.mrf.mxu0
    %v631 = vadd.f32 %v564, %v630
    %632 = vmatmul.bf16.gmra.mxu0 %v532
    %v633 = vpop.f32.mrf.mxu0
    %v634 = vadd.f32 %v564, %v633
    %v635 = vpop.f32.mrf.mxu0
    %v636 = vadd.f32 %v564, %v635
    %637 = vmatmul.bf16.gmra.mxu0 %v533
    %v638 = vpop.f32.mrf.mxu0
    %v639 = vadd.f32 %v564, %v638
    %v640 = vpop.f32.mrf.mxu0
    %v641 = vadd.f32 %v564, %v640
    %642 = vmatmul.bf16.gmra.mxu0 %v534
    %v643 = vpop.f32.mrf.mxu0
    %v644 = vadd.f32 %v564, %v643
    %v645 = vpop.f32.mrf.mxu0
    %v646 = vadd.f32 %v564, %v645
    %647 = vmatmul.bf16.gmra.mxu0 %v535
    %v648 = vpop.f32.mrf.mxu0
    %v649 = vadd.f32 %v564, %v648
    %v650 = vpop.f32.mrf.mxu0
    %v651 = vadd.f32 %v564, %v650
    %652 = vmatmul.bf16.gmra.mxu0 %v536
    %v653 = vpop.f32.mrf.mxu0
    %v654 = vadd.f32 %v564, %v653
    %v655 = vpop.f32.mrf.mxu0
    %v656 = vadd.f32 %v564, %v655
    %657 = vmatmul.bf16.gmra.mxu0 %v537
    %v658 = vpop.f32.mrf.mxu0
    %v659 = vadd.f32 %v564, %v658
    %v660 = vpop.f32.mrf.mxu0
    %v661 = vadd.f32 %v564, %v660
    %662 = vmatmul.bf16.gmra.mxu0 %v538
    %v663 = vpop.f32.mrf.mxu0
    %v664 = vadd.f32 %v564, %v663
    %v665 = vpop.f32.mrf.mxu0
    %v666 = vadd.f32 %v564, %v665
    %667 = vmatmul.bf16.gmra.mxu0 %v539
    %v668 = vpop.f32.mrf.mxu0
    %v669 = vadd.f32 %v564, %v668
    %v670 = vpop.f32.mrf.mxu0
    %v671 = vadd.f32 %v564, %v670
    %672 = vmatmul.bf16.gmra.mxu0 %v540
    %v673 = vpop.f32.mrf.mxu0
    %v674 = vadd.f32 %v564, %v673
    %v675 = vpop.f32.mrf.mxu0
    %v676 = vadd.f32 %v564, %v675
    %677 = vmatmul.bf16.gmra.mxu0 %v541
    %v678 = vpop.f32.mrf.mxu0
    %v679 = vadd.f32 %v564, %v678
    %v680 = vpop.f32.mrf.mxu0
    %v681 = vadd.f32 %v564, %v680
    %682 = vmatmul.bf16.gmra.mxu0 %v542
    %v683 = vpop.f32.mrf.mxu0
    %v684 = vadd.f32 %v564, %v683
    %v685 = vpop.f32.mrf.mxu0
    %v686 = vadd.f32 %v564, %v685
    %687 = vmatmul.bf16.gmra.mxu0 %v543
    %v688 = vpop.f32.mrf.mxu0
    %v689 = vadd.f32 %v564, %v688
    %v690 = vpop.f32.mrf.mxu0
    %v691 = vadd.f32 %v564, %v690
    %692 = vmatmul.bf16.gmra.mxu0 %v544
    %v693 = vpop.f32.mrf.mxu0
    %v694 = vadd.f32 %v564, %v693
    %v695 = vpop.f32.mrf.mxu0
    %v696 = vadd.f32 %v564, %v695
    %697 = vmatmul.bf16.gmra.mxu0 %v545
    %v698 = vpop.f32.mrf.mxu0
    %v699 = vadd.f32 %v564, %v698
    %v700 = vpop.f32.mrf.mxu0
    %v701 = vadd.f32 %v564, %v700
    %702 = vdwg.mxu0
    %v703 = vmul.f32 %v624, 0.2
    %v704 = vmul.f32 %v626, 0.2
    %v705 = vmul.f32 %v629, 0.2
    %v706 = vmul.f32 %v631, 0.2
    %v707 = vmul.f32 %v634, 0.2
    %v708 = vmul.f32 %v636, 0.2
    %v709 = vmul.f32 %v639, 0.2
    %v710 = vmul.f32 %v641, 0.2
    %v711 = vmul.f32 %v644, 0.2
    %v712 = vmul.f32 %v646, 0.2
    %v713 = vmul.f32 %v649, 0.2
    %v714 = vmul.f32 %v651, 0.2
    %v715 = vmul.f32 %v654, 0.2
    %v716 = vmul.f32 %v656, 0.2
    %v717 = vmul.f32 %v659, 0.2
    %v718 = vmul.f32 %v661, 0.2
    %v719 = vmul.f32 %v664, 0.2
    %v720 = vmul.f32 %v666, 0.2
    %v721 = vmul.f32 %v669, 0.2
    %v722 = vmul.f32 %v671, 0.2
    %v723 = vmul.f32 %v674, 0.2
    %v724 = vmul.f32 %v676, 0.2
    %v725 = vmul.f32 %v679, 0.2
    %v726 = vmul.f32 %v681, 0.2
    %v727 = vmul.f32 %v684, 0.2
    %v728 = vmul.f32 %v686, 0.2
    %v729 = vmul.f32 %v689, 0.2
    %v730 = vmul.f32 %v691, 0.2
    %v731 = vmul.f32 %v694, 0.2
    %v732 = vmul.f32 %v696, 0.2
    %v733 = vmul.f32 %v699, 0.2
    %v734 = vmul.f32 %v701, 0.2
    %v735 = vmax.f32 %v624, %v703
    %v736 = vmax.f32 %v626, %v704
    %v737 = vmax.f32 %v629, %v705
    %v738 = vmax.f32 %v631, %v706
    %v739 = vmax.f32 %v634, %v707
    %v740 = vmax.f32 %v636, %v708
    %v741 = vmax.f32 %v639, %v709
    %v742 = vmax.f32 %v641, %v710
    %v743 = vmax.f32 %v644, %v711
    %v744 = vmax.f32 %v646, %v712
    %v745 = vmax.f32 %v649, %v713
    %v746 = vmax.f32 %v651, %v714
    %v747 = vmax.f32 %v654, %v715
    %v748 = vmax.f32 %v656, %v716
    %v749 = vmax.f32 %v659, %v717
    %v750 = vmax.f32 %v661, %v718
    %v751 = vmax.f32 %v664, %v719
    %v752 = vmax.f32 %v666, %v720
    %v753 = vmax.f32 %v669, %v721
    %v754 = vmax.f32 %v671, %v722
    %v755 = vmax.f32 %v674, %v723
    %v756 = vmax.f32 %v676, %v724
    %v757 = vmax.f32 %v679, %v725
    %v758 = vmax.f32 %v681, %v726
    %v759 = vmax.f32 %v684, %v727
    %v760 = vmax.f32 %v686, %v728
    %v761 = vmax.f32 %v689, %v729
    %v762 = vmax.f32 %v691, %v730
    %v763 = vmax.f32 %v694, %v731
    %v764 = vmax.f32 %v696, %v732
    %v765 = vmax.f32 %v699, %v733
    %v766 = vmax.f32 %v701, %v734
    %v767 = vpack.c.bf16 %v736, %v735
    %v768 = vpack.c.bf16 %v738, %v737
    %v769 = vpack.c.bf16 %v740, %v739
    %v770 = vpack.c.bf16 %v742, %v741
    %v771 = vpack.c.bf16 %v744, %v743
    %v772 = vpack.c.bf16 %v746, %v745
    %v773 = vpack.c.bf16 %v748, %v747
    %v774 = vpack.c.bf16 %v750, %v749
    %v775 = vpack.c.bf16 %v752, %v751
    %v776 = vpack.c.bf16 %v754, %v753
    %v777 = vpack.c.bf16 %v756, %v755
    %v778 = vpack.c.bf16 %v758, %v757
    %v779 = vpack.c.bf16 %v760, %v759
    %v780 = vpack.c.bf16 %v762, %v761
    %v781 = vpack.c.bf16 %v764, %v763
    %v782 = vpack.c.bf16 %v766, %v765
    %v783 = vld [vmem:[%s5] sm:$0xf]
    %v784 = vld [vmem:[%s5 + $0x4] sm:$0xf]
    %v785 = vld [vmem:[%s5 + $0x8] sm:$0xf]
    %v786 = vld [vmem:[%s5 + $0xc] sm:$0xf]
    %v787 = vld [vmem:[%s5 + $0x10] sm:$0xf]
    %v788 = vld [vmem:[%s5 + $0x14] sm:$0xf]
    %v789 = vld [vmem:[%s5 + $0x18] sm:$0xf]
    %v790 = vld [vmem:[%s5 + $0x1c] sm:$0xf]
    %v791 = vld [vmem:[%s5 + $0x20] sm:$0xf]
    %v792 = vld [vmem:[%s5 + $0x24] sm:$0xf]
    %v793 = vld [vmem:[%s5 + $0x28] sm:$0xf]
    %v794 = vld [vmem:[%s5 + $0x2c] sm:$0xf]
    %v795 = vld [vmem:[%s5 + $0x30] sm:$0xf]
    %v796 = vld [vmem:[%s5 + $0x34] sm:$0xf]
    %v797 = vld [vmem:[%s5 + $0x38] sm:$0xf]
    %v798 = vld [vmem:[%s5 + $0x3c] sm:$0xf]
    %v799 = vld [vmem:[#allocation2] sm:$0x1]
    %v801 = vperm.slane %v799, 0
    %v819 = vunpack.c.l.b16 %v783
    %v820 = vunpack.c.l.b16 %v784
    %v821 = vunpack.c.l.b16 %v785
    %v822 = vunpack.c.l.b16 %v786
    %v823 = vunpack.c.l.b16 %v787
    %v824 = vunpack.c.l.b16 %v788
    %v825 = vunpack.c.l.b16 %v789
    %v826 = vunpack.c.l.b16 %v790
    %v827 = vunpack.c.l.b16 %v791
    %v828 = vunpack.c.l.b16 %v792
    %v829 = vunpack.c.l.b16 %v793
    %v830 = vunpack.c.l.b16 %v794
    %v831 = vunpack.c.l.b16 %v795
    %v832 = vunpack.c.l.b16 %v796
    %v833 = vunpack.c.l.b16 %v797
    %v834 = vunpack.c.l.b16 %v798
    %v835 = vpack.c.b16 %v820, %v819
    %v836 = vpack.c.b16 %v822, %v821
    %v837 = vpack.c.b16 %v824, %v823
    %v838 = vpack.c.b16 %v826, %v825
    %v839 = vpack.c.b16 %v828, %v827
    %v840 = vpack.c.b16 %v830, %v829
    %v841 = vpack.c.b16 %v832, %v831
    %v842 = vpack.c.b16 %v834, %v833
    %851 = vmatpush.bf16.msra.mxu0 %v842
    %852 = vmatpush.bf16.msra.mxu0 %v841
    %853 = vmatpush.bf16.msra.mxu0 %v840
    %854 = vmatpush.bf16.msra.mxu0 %v839
    %855 = vmatpush.bf16.msra.mxu0 %v838
    %856 = vmatpush.bf16.msra.mxu0 %v837
    %857 = vmatpush.bf16.msra.mxu0 %v836
    %858 = vmatpush.bf16.msra.mxu0 %v835
    %859 = vmatmul.bf16.gmra.mxu0 %v767
    %v860 = vpop.f32.mrf.mxu0
    %v861 = vadd.f32 %v801, %v860
    %v862 = vpop.f32.mrf.mxu0
    %v863 = vadd.f32 %v801, %v862
    %864 = vmatmul.bf16.gmra.mxu0 %v768
    %v865 = vpop.f32.mrf.mxu0
    %v866 = vadd.f32 %v801, %v865
    %v867 = vpop.f32.mrf.mxu0
    %v868 = vadd.f32 %v801, %v867
    %869 = vmatmul.bf16.gmra.mxu0 %v769
    %v870 = vpop.f32.mrf.mxu0
    %v871 = vadd.f32 %v801, %v870
    %v872 = vpop.f32.mrf.mxu0
    %v873 = vadd.f32 %v801, %v872
    %874 = vmatmul.bf16.gmra.mxu0 %v770
    %v875 = vpop.f32.mrf.mxu0
    %v876 = vadd.f32 %v801, %v875
    %v877 = vpop.f32.mrf.mxu0
    %v878 = vadd.f32 %v801, %v877
    %879 = vmatmul.bf16.gmra.mxu0 %v771
    %v880 = vpop.f32.mrf.mxu0
    %v881 = vadd.f32 %v801, %v880
    %v882 = vpop.f32.mrf.mxu0
    %v883 = vadd.f32 %v801, %v882
    %884 = vmatmul.bf16.gmra.mxu0 %v772
    %v885 = vpop.f32.mrf.mxu0
    %v886 = vadd.f32 %v801, %v885
    %v887 = vpop.f32.mrf.mxu0
    %v888 = vadd.f32 %v801, %v887
    %889 = vmatmul.bf16.gmra.mxu0 %v773
    %v890 = vpop.f32.mrf.mxu0
    %v891 = vadd.f32 %v801, %v890
    %v892 = vpop.f32.mrf.mxu0
    %v893 = vadd.f32 %v801, %v892
    %894 = vmatmul.bf16.gmra.mxu0 %v774
    %v895 = vpop.f32.mrf.mxu0
    %v896 = vadd.f32 %v801, %v895
    %v897 = vpop.f32.mrf.mxu0
    %v898 = vadd.f32 %v801, %v897
    %899 = vmatmul.bf16.gmra.mxu0 %v775
    %v900 = vpop.f32.mrf.mxu0
    %v901 = vadd.f32 %v801, %v900
    %v902 = vpop.f32.mrf.mxu0
    %v903 = vadd.f32 %v801, %v902
    %904 = vmatmul.bf16.gmra.mxu0 %v776
    %v905 = vpop.f32.mrf.mxu0
    %v906 = vadd.f32 %v801, %v905
    %v907 = vpop.f32.mrf.mxu0
    %v908 = vadd.f32 %v801, %v907
    %909 = vmatmul.bf16.gmra.mxu0 %v777
    %v910 = vpop.f32.mrf.mxu0
    %v911 = vadd.f32 %v801, %v910
    %v912 = vpop.f32.mrf.mxu0
    %v913 = vadd.f32 %v801, %v912
    %914 = vmatmul.bf16.gmra.mxu0 %v778
    %v915 = vpop.f32.mrf.mxu0
    %v916 = vadd.f32 %v801, %v915
    %v917 = vpop.f32.mrf.mxu0
    %v918 = vadd.f32 %v801, %v917
    %919 = vmatmul.bf16.gmra.mxu0 %v779
    %v920 = vpop.f32.mrf.mxu0
    %v921 = vadd.f32 %v801, %v920
    %v922 = vpop.f32.mrf.mxu0
    %v923 = vadd.f32 %v801, %v922
    %924 = vmatmul.bf16.gmra.mxu0 %v780
    %v925 = vpop.f32.mrf.mxu0
    %v926 = vadd.f32 %v801, %v925
    %v927 = vpop.f32.mrf.mxu0
    %v928 = vadd.f32 %v801, %v927
    %929 = vmatmul.bf16.gmra.mxu0 %v781
    %v930 = vpop.f32.mrf.mxu0
    %v931 = vadd.f32 %v801, %v930
    %v932 = vpop.f32.mrf.mxu0
    %v933 = vadd.f32 %v801, %v932
    %934 = vmatmul.bf16.gmra.mxu0 %v782
    %v935 = vpop.f32.mrf.mxu0
    %v936 = vadd.f32 %v801, %v935
    %v937 = vpop.f32.mrf.mxu0
    %v938 = vadd.f32 %v801, %v937
    %939 = vdwg.mxu0
    %v940 = vsub.f32 0.0, %v861
    %v941 = vsub.f32 0.0, %v863
    %v942 = vsub.f32 0.0, %v866
    %v943 = vsub.f32 0.0, %v868
    %v944 = vsub.f32 0.0, %v871
    %v945 = vsub.f32 0.0, %v873
    %v946 = vsub.f32 0.0, %v876
    %v947 = vsub.f32 0.0, %v878
    %v948 = vsub.f32 0.0, %v881
    %v949 = vsub.f32 0.0, %v883
    %v950 = vsub.f32 0.0, %v886
    %v951 = vsub.f32 0.0, %v888
    %v952 = vsub.f32 0.0, %v891
    %v953 = vsub.f32 0.0, %v893
    %v954 = vsub.f32 0.0, %v896
    %v955 = vsub.f32 0.0, %v898
    %v956 = vsub.f32 0.0, %v901
    %v957 = vsub.f32 0.0, %v903
    %v958 = vsub.f32 0.0, %v906
    %v959 = vsub.f32 0.0, %v908
    %v960 = vsub.f32 0.0, %v911
    %v961 = vsub.f32 0.0, %v913
    %v962 = vsub.f32 0.0, %v916
    %v963 = vsub.f32 0.0, %v918
    %v964 = vsub.f32 0.0, %v921
    %v965 = vsub.f32 0.0, %v923
    %v966 = vsub.f32 0.0, %v926
    %v967 = vsub.f32 0.0, %v928
    %v968 = vsub.f32 0.0, %v931
    %v969 = vsub.f32 0.0, %v933
    %v970 = vsub.f32 0.0, %v936
    %v971 = vsub.f32 0.0, %v938
    %v972 = vmul.f32 %v940, 1.442695
    %v973 = vpow.pop %v972
    %v974 = vmul.f32 %v941, 1.442695
    %v975 = vpow.pop %v974
    %v976 = vmul.f32 %v942, 1.442695
    %v977 = vpow.pop %v976
    %v978 = vmul.f32 %v943, 1.442695
    %v979 = vpow.pop %v978
    %v980 = vmul.f32 %v944, 1.442695
    %v981 = vpow.pop %v980
    %v982 = vmul.f32 %v945, 1.442695
    %v983 = vpow.pop %v982
    %v984 = vmul.f32 %v946, 1.442695
    %v985 = vpow.pop %v984
    %v986 = vmul.f32 %v947, 1.442695
    %v987 = vpow.pop %v986
    %v988 = vmul.f32 %v948, 1.442695
    %v989 = vpow.pop %v988
    %v990 = vmul.f32 %v949, 1.442695
    %v991 = vpow.pop %v990
    %v992 = vmul.f32 %v950, 1.442695
    %v993 = vpow.pop %v992
    %v994 = vmul.f32 %v951, 1.442695
    %v995 = vpow.pop %v994
    %v996 = vmul.f32 %v952, 1.442695
    %v997 = vpow.pop %v996
    %v998 = vmul.f32 %v953, 1.442695
    %v999 = vpow.pop %v998
    %v1000 = vmul.f32 %v954, 1.442695
    %v1001 = vpow.pop %v1000
    %v1002 = vmul.f32 %v955, 1.442695
    %v1003 = vpow.pop %v1002
    %v1004 = vmul.f32 %v956, 1.442695
    %v1005 = vpow.pop %v1004
    %v1006 = vmul.f32 %v957, 1.442695
    %v1007 = vpow.pop %v1006
    %v1008 = vmul.f32 %v958, 1.442695
    %v1009 = vpow.pop %v1008
    %v1010 = vmul.f32 %v959, 1.442695
    %v1011 = vpow.pop %v1010
    %v1012 = vmul.f32 %v960, 1.442695
    %v1013 = vpow.pop %v1012
    %v1014 = vmul.f32 %v961, 1.442695
    %v1015 = vpow.pop %v1014
    %v1016 = vmul.f32 %v962, 1.442695
    %v1017 = vpow.pop %v1016
    %v1018 = vmul.f32 %v963, 1.442695
    %v1019 = vpow.pop %v1018
    %v1020 = vmul.f32 %v964, 1.442695
    %v1021 = vpow.pop %v1020
    %v1022 = vmul.f32 %v965, 1.442695
    %v1023 = vpow.pop %v1022
    %v1024 = vmul.f32 %v966, 1.442695
    %v1025 = vpow.pop %v1024
    %v1026 = vmul.f32 %v967, 1.442695
    %v1027 = vpow.pop %v1026
    %v1028 = vmul.f32 %v968, 1.442695
    %v1029 = vpow.pop %v1028
    %v1030 = vmul.f32 %v969, 1.442695
    %v1031 = vpow.pop %v1030
    %v1032 = vmul.f32 %v970, 1.442695
    %v1033 = vpow.pop %v1032
    %v1034 = vmul.f32 %v971, 1.442695
    %v1035 = vpow.pop %v1034
    %v1036 = vadd.f32 %v973, 1.0
    %v1037 = vadd.f32 %v975, 1.0
    %v1038 = vadd.f32 %v977, 1.0
    %v1039 = vadd.f32 %v979, 1.0
    %v1040 = vadd.f32 %v981, 1.0
    %v1041 = vadd.f32 %v983, 1.0
    %v1042 = vadd.f32 %v985, 1.0
    %v1043 = vadd.f32 %v987, 1.0
    %v1044 = vadd.f32 %v989, 1.0
    %v1045 = vadd.f32 %v991, 1.0
    %v1046 = vadd.f32 %v993, 1.0
    %v1047 = vadd.f32 %v995, 1.0
    %v1048 = vadd.f32 %v997, 1.0
    %v1049 = vadd.f32 %v999, 1.0
    %v1050 = vadd.f32 %v1001, 1.0
    %v1051 = vadd.f32 %v1003, 1.0
    %v1052 = vadd.f32 %v1005, 1.0
    %v1053 = vadd.f32 %v1007, 1.0
    %v1054 = vadd.f32 %v1009, 1.0
    %v1055 = vadd.f32 %v1011, 1.0
    %v1056 = vadd.f32 %v1013, 1.0
    %v1057 = vadd.f32 %v1015, 1.0
    %v1058 = vadd.f32 %v1017, 1.0
    %v1059 = vadd.f32 %v1019, 1.0
    %v1060 = vadd.f32 %v1021, 1.0
    %v1061 = vadd.f32 %v1023, 1.0
    %v1062 = vadd.f32 %v1025, 1.0
    %v1063 = vadd.f32 %v1027, 1.0
    %v1064 = vadd.f32 %v1029, 1.0
    %v1065 = vadd.f32 %v1031, 1.0
    %v1066 = vadd.f32 %v1033, 1.0
    %v1067 = vadd.f32 %v1035, 1.0
    %v1068 = vrcp.pop %v1036
    %v1069 = vrcp.pop %v1037
    %v1070 = vrcp.pop %v1038
    %v1071 = vrcp.pop %v1039
    %v1072 = vrcp.pop %v1040
    %v1073 = vrcp.pop %v1041
    %v1074 = vrcp.pop %v1042
    %v1075 = vrcp.pop %v1043
    %v1076 = vrcp.pop %v1044
    %v1077 = vrcp.pop %v1045
    %v1078 = vrcp.pop %v1046
    %v1079 = vrcp.pop %v1047
    %v1080 = vrcp.pop %v1048
    %v1081 = vrcp.pop %v1049
    %v1082 = vrcp.pop %v1050
    %v1083 = vrcp.pop %v1051
    %v1084 = vrcp.pop %v1052
    %v1085 = vrcp.pop %v1053
    %v1086 = vrcp.pop %v1054
    %v1087 = vrcp.pop %v1055
    %v1088 = vrcp.pop %v1056
    %v1089 = vrcp.pop %v1057
    %v1090 = vrcp.pop %v1058
    %v1091 = vrcp.pop %v1059
    %v1092 = vrcp.pop %v1060
    %v1093 = vrcp.pop %v1061
    %v1094 = vrcp.pop %v1062
    %v1095 = vrcp.pop %v1063
    %v1096 = vrcp.pop %v1064
    %v1097 = vrcp.pop %v1065
    %v1098 = vrcp.pop %v1066
    %v1099 = vrcp.pop %v1067
    %vm1100 = vcmask 7168
    %1101 = vst.msk [vmem:[%s7] sm:$0xff] %vm1100, %v1068
    %1102 = vst.msk [vmem:[%s7 + $0x8] sm:$0xff] %vm1100, %v1069
    %1103 = vst.msk [vmem:[%s7 + $0x10] sm:$0xff] %vm1100, %v1070
    %1104 = vst.msk [vmem:[%s7 + $0x18] sm:$0xff] %vm1100, %v1071
    %1105 = vst.msk [vmem:[%s7 + $0x20] sm:$0xff] %vm1100, %v1072
    %1106 = vst.msk [vmem:[%s7 + $0x28] sm:$0xff] %vm1100, %v1073
    %1107 = vst.msk [vmem:[%s7 + $0x30] sm:$0xff] %vm1100, %v1074
    %1108 = vst.msk [vmem:[%s7 + $0x38] sm:$0xff] %vm1100, %v1075
    %1109 = vst.msk [vmem:[%s7 + $0x40] sm:$0xff] %vm1100, %v1076
    %1110 = vst.msk [vmem:[%s7 + $0x48] sm:$0xff] %vm1100, %v1077
    %1111 = vst.msk [vmem:[%s7 + $0x50] sm:$0xff] %vm1100, %v1078
    %1112 = vst.msk [vmem:[%s7 + $0x58] sm:$0xff] %vm1100, %v1079
    %1113 = vst.msk [vmem:[%s7 + $0x60] sm:$0xff] %vm1100, %v1080
    %1114 = vst.msk [vmem:[%s7 + $0x68] sm:$0xff] %vm1100, %v1081
    %1115 = vst.msk [vmem:[%s7 + $0x70] sm:$0xff] %vm1100, %v1082
    %1116 = vst.msk [vmem:[%s7 + $0x78] sm:$0xff] %vm1100, %v1083
    %1117 = vst.msk [vmem:[%s7 + $0x80] sm:$0xff] %vm1100, %v1084
    %1118 = vst.msk [vmem:[%s7 + $0x88] sm:$0xff] %vm1100, %v1085
    %1119 = vst.msk [vmem:[%s7 + $0x90] sm:$0xff] %vm1100, %v1086
    %1120 = vst.msk [vmem:[%s7 + $0x98] sm:$0xff] %vm1100, %v1087
    %1121 = vst.msk [vmem:[%s7 + $0xa0] sm:$0xff] %vm1100, %v1088
    %1122 = vst.msk [vmem:[%s7 + $0xa8] sm:$0xff] %vm1100, %v1089
    %1123 = vst.msk [vmem:[%s7 + $0xb0] sm:$0xff] %vm1100, %v1090
    %1124 = vst.msk [vmem:[%s7 + $0xb8] sm:$0xff] %vm1100, %v1091
    %1125 = vst.msk [vmem:[%s7 + $0xc0] sm:$0xff] %vm1100, %v1092
    %1126 = vst.msk [vmem:[%s7 + $0xc8] sm:$0xff] %vm1100, %v1093
    %1127 = vst.msk [vmem:[%s7 + $0xd0] sm:$0xff] %vm1100, %v1094
    %1128 = vst.msk [vmem:[%s7 + $0xd8] sm:$0xff] %vm1100, %v1095
    %1129 = vst.msk [vmem:[%s7 + $0xe0] sm:$0xff] %vm1100, %v1096
    %1130 = vst.msk [vmem:[%s7 + $0xe8] sm:$0xff] %vm1100, %v1097
    %1131 = vst.msk [vmem:[%s7 + $0xf0] sm:$0xff] %vm1100, %v1098
    %1132 = vst.msk [vmem:[%s7 + $0xf8] sm:$0xff] %vm1100, %v1099
    // Predicated region
    $region38: #{tpu_custom_call.1} parent=1 // pred_check
      _
    $region39: #{tpu_custom_call.1} parent=1 // pred_check_branch
      %1134 = sbr.rel (0) target = $region41
    $region40: #{tpu_custom_call.1} parent=1 // pred_region
      _
    $region41: #{tpu_custom_call.1} parent=1 // pred_fallthru
      _
    // Predicated region
    $region42: #{tpu_custom_call.1} parent=1 // pred_check
      _
    $region43: #{tpu_custom_call.1} parent=1 // pred_check_branch
      %1136 = sbr.rel (0) target = $region45
    $region44: #{tpu_custom_call.1} parent=1 // pred_region
      _
    $region45: #{tpu_custom_call.1} parent=1 // pred_fallthru
      _
    %1137 = vsyncpa [#allocation4], 1
    %1138 = vsyncpa [#allocation6], 1

</llo_original>
